<compile_context>
chip_gen: v6e
topology: v6e:2x2x1
jax: 0.10.0
libtpu: 0.0.40
codegen_flags: <defaults>
</compile_context>

<pallas_src>
import math

import jax
import jax.numpy as jnp
from jax.experimental import pallas as pl
from jax.experimental.pallas import tpu as pltpu


def _round_up(x: int, m: int) -> int:
    return (x + m - 1) // m * m


# Tile caps, portable across v5e/v6e (128 MiB VMEM) and v7x (64 MiB per TC).
# Worst case f32 working set (double-buffered x, w, out tiles) is ~16 MiB.
_TM_CAP = 512
_TN_CAP = 1024
_TK_CAP = 1024
# Raise the scoped VMEM limit (v5e default is 16 MiB); stay under v7x's 64 MiB physical.
_VMEM_LIMIT_BYTES = 48 * 1024 * 1024


def _k_plan(in_features: int):
    """Return (tk, Fp). Single K step (tk == Fp == F) when F fits in one tile."""
    if _round_up(in_features, 128) <= _TK_CAP:
        return in_features, in_features
    tk = _TK_CAP
    return tk, _round_up(in_features, tk)


def _linear_kernel_single(x_ref, w_ref, b_ref, o_ref):
    # Whole reduction dim in one tile: no accumulator scratch, no phases.
    o_ref[...] = (
        jnp.dot(x_ref[...], w_ref[...], preferred_element_type=jnp.float32)
        + b_ref[...]
    ).astype(o_ref.dtype)


def _linear_kernel_multi(x_ref, w_ref, b_ref, o_ref):
    # K-looped path: the f32 output block is resident across k (out index_map ignores k),
    # so accumulate directly into it; initialize with the broadcast bias at k == 0.
    k = pl.program_id(2)

    @pl.when(k == 0)
    def _():
        o_ref[...] = jnp.broadcast_to(b_ref[...], o_ref.shape).astype(o_ref.dtype)

    o_ref[...] += jnp.dot(x_ref[...], w_ref[...], preferred_element_type=jnp.float32)


def pack_params(weight: jax.Array, bias: jax.Array, *, compute_dtype=jnp.float32):
    """One-time (init/load-time) parameter prep — NOT in the per-forward path.

    weight: (C, F) PyTorch nn.Linear layout
    bias:   (C,)
    returns (w_packed (Fp, C), bias_packed (1, C))
    """
    C, F = weight.shape
    w_t = weight.T.astype(compute_dtype)          # K-major RHS: lane-dense class axis
    _, Fp = _k_plan(F)
    if Fp != F:
        # Zero-pad the reduction axis only (must be exact zeros for correctness).
        w_t = jnp.pad(w_t, ((0, Fp - F), (0, 0)))
    b = bias.astype(jnp.float32).reshape(1, C)
    return w_t, b


def softmax_head(x: jax.Array, w_packed: jax.Array, bias_packed: jax.Array,
                 *, compute_dtype=jnp.float32) -> jax.Array:
    """Pallas equivalent of SoftMax.forward == F.linear(x, weight, bias).

    x:           (B, F)
    w_packed:    (Fp, C)  from pack_params (pre-transposed, F zero-padded if needed)
    bias_packed: (1, C)   f32
    returns      (B, C)   f32 logits
    """
    B, F = x.shape
    Fp_w, C = w_packed.shape
    tk, Fp = _k_plan(F)
    assert Fp_w == Fp, "w_packed was packed for a different in_features / tile plan"

    x = x.astype(compute_dtype)
    if Fp != F:
        # Only the reduction axis needs exact zero padding; B/C stay ragged.
        x = jnp.pad(x, ((0, 0), (0, Fp - F)))

    tm = min(_round_up(B, 8), _TM_CAP)
    tn = min(_round_up(C, 128), _TN_CAP)
    grid_m = pl.cdiv(B, tm)
    grid_n = pl.cdiv(C, tn)

    cost = pl.CostEstimate(
        flops=2 * B * C * Fp,
        transcendentals=0,
        bytes_accessed=(x.dtype.itemsize * B * Fp
                        + w_packed.dtype.itemsize * Fp * C
                        + 4 * B * C),
    )
    compiler_params_2d = pltpu.CompilerParams(
        dimension_semantics=("parallel", "parallel"),
        vmem_limit_bytes=_VMEM_LIMIT_BYTES,
    )
    compiler_params_3d = pltpu.CompilerParams(
        dimension_semantics=("parallel", "parallel", "arbitrary"),
        vmem_limit_bytes=_VMEM_LIMIT_BYTES,
    )

    if tk == Fp:
        # Single K step: F lives in one tile, no accumulator needed.
        return pl.pallas_call(
            _linear_kernel_single,
            out_shape=jax.ShapeDtypeStruct((B, C), jnp.float32),
            grid_spec=pltpu.PrefetchScalarGridSpec(
                num_scalar_prefetch=0,
                grid=(grid_m, grid_n),
                in_specs=[
                    pl.BlockSpec((tm, Fp), lambda i, j: (i, 0)),   # activations
                    pl.BlockSpec((Fp, tn), lambda i, j: (0, j)),   # K-major weight
                    pl.BlockSpec((1, tn), lambda i, j: (0, j)),    # bias (lane-dense)
                ],
                out_specs=pl.BlockSpec((tm, tn), lambda i, j: (i, j)),
            ),
            compiler_params=compiler_params_2d,
            cost_estimate=cost,
        )(x, w_packed, bias_packed)

    # K-looped path (F > one tile).  Reduction axis last + "arbitrary".
    grid_k = Fp // tk
    return pl.pallas_call(
        _linear_kernel_multi,
        out_shape=jax.ShapeDtypeStruct((B, C), jnp.float32),
        grid_spec=pltpu.PrefetchScalarGridSpec(
            num_scalar_prefetch=0,
            grid=(grid_m, grid_n, grid_k),
            in_specs=[
                pl.BlockSpec((tm, tk), lambda i, j, k: (i, k)),    # activations
                # TODO(synk): if profiling on v7x shows the weight DMA exposed (bf16,
                # small B), add pipeline_mode=pl.Buffered(3) to this spec only.
                pl.BlockSpec((tk, tn), lambda i, j, k: (k, j)),    # K-major weight
                pl.BlockSpec((1, tn), lambda i, j, k: (0, j)),     # bias
            ],
            out_specs=pl.BlockSpec((tm, tn), lambda i, j, k: (i, j)),
        ),
        compiler_params=compiler_params_3d,
        cost_estimate=cost,
    )(x, w_packed, bias_packed)


def init_params(key, in_features: int, num_classes: int):
    # Deterministic re-implementation of the PyTorch __init__:
    #   nn.init.xavier_uniform_(weight) ; nn.init.zeros_(bias)
    bound = math.sqrt(6.0 / (in_features + num_classes))
    weight = jax.random.uniform(
        key, (num_classes, in_features), dtype=jnp.float32,
        minval=-bound, maxval=bound,
    )
    bias = jnp.zeros((num_classes,), dtype=jnp.float32)
    return weight, bias


# TODO(synk): if this head always feeds a cross-entropy, fuse the online-softmax
# (row max / exp / sum) into the kernel epilogue to skip the (B, C) logits HBM round trip.

if __name__ == "__main__":
    key = jax.random.PRNGKey(0)

    # --- Small-shape demo (single K-step path): B=8, F=32, C=16 ---
    in_features, num_classes, batch = 32, 16, 8
    k_x, k_w, k_x2, k_w2 = jax.random.split(key, 4)

    x = jax.random.normal(k_x, (batch, in_features), dtype=jnp.float32)
    weight, bias = init_params(k_w, in_features, num_classes)
    w_packed, b_packed = pack_params(weight, bias)          # one-time, not per forward

    out = jax.block_until_ready(softmax_head(x, w_packed, b_packed))
    ref = x @ weight.T + bias
    assert out.shape == (batch, num_classes)
    assert jnp.allclose(out, ref, atol=1e-5, rtol=1e-5)

    # --- Exercise the K-looped (F > 1024) accumulate-into-output path as well ---
    in_features2, num_classes2, batch2 = 2176, 16, 8
    x2 = jax.random.normal(k_x2, (batch2, in_features2), dtype=jnp.float32)
    weight2, bias2 = init_params(k_w2, in_features2, num_classes2)
    w_packed2, b_packed2 = pack_params(weight2, bias2)

    out2 = jax.block_until_ready(softmax_head(x2, w_packed2, b_packed2))
    ref2 = x2 @ weight2.T + bias2
    assert out2.shape == (batch2, num_classes2)
    assert jnp.allclose(out2, ref2, atol=1e-4, rtol=1e-5)

    print("KERNEL_OK")
</pallas_src>

<mosaic_0001>
module attributes {stable_mosaic.version = 11 : i64} {
  func.func @_linear_kernel_single(%arg0: i32, %arg1: i32, %arg2: memref<8x32xf32, #tpu.memory_space<vmem>>, %arg3: memref<32x128xf32, #tpu.memory_space<vmem>>, %arg4: memref<1x128xf32, #tpu.memory_space<vmem>>, %arg5: memref<8x128xf32, #tpu.memory_space<vmem>>) attributes {dimension_semantics = [#tpu.dimension_semantics<parallel>, #tpu.dimension_semantics<parallel>], iteration_bounds = array<i64: 1, 1>, scalar_prefetch = 0 : i64, scratch_operands = 0 : i64, tpu.core_type = #tpu.core_type<tc>, window_params = [{transform_indices = @transform_0, window_bounds = array<i64: 8, 32>}, {transform_indices = @transform_1, window_bounds = array<i64: 32, 128>}, {transform_indices = @transform_2, window_bounds = array<i64: 1, 128>}, {transform_indices = @transform_3, window_bounds = array<i64: 8, 128>}]} {
    %c0 = arith.constant 0 : index
    %c0_0 = arith.constant 0 : index
    %0 = vector.load %arg2[%c0, %c0_0] : memref<8x32xf32, #tpu.memory_space<vmem>>, vector<8x32xf32>
    %c0_1 = arith.constant 0 : index
    %c0_2 = arith.constant 0 : index
    %1 = vector.load %arg3[%c0_1, %c0_2] : memref<32x128xf32, #tpu.memory_space<vmem>>, vector<32x128xf32>
    %cst = arith.constant dense<0.000000e+00> : vector<8x128xf32>
    %2 = tpu.matmul %0, %1, %cst {dimension_numbers = #tpu.dot_dimension_numbers<[1], [0], [0], [1], [0, 0, 1, 1], [], []>} : vector<8x32xf32>, vector<32x128xf32>, vector<8x128xf32> -> vector<8x128xf32>
    %c0_3 = arith.constant 0 : index
    %c0_4 = arith.constant 0 : index
    %3 = vector.load %arg4[%c0_3, %c0_4] : memref<1x128xf32, #tpu.memory_space<vmem>>, vector<1x128xf32>
    %4 = vector.broadcast %3 : vector<1x128xf32> to vector<8x128xf32>
    %5 = arith.addf %2, %4 : vector<8x128xf32>
    %c0_5 = arith.constant 0 : index
    %c0_6 = arith.constant 0 : index
    %6 = vector.load %arg5[%c0_5, %c0_6] : memref<8x128xf32, #tpu.memory_space<vmem>>, vector<8x128xf32>
    tpu.vector_store %arg5[%c0_5, %c0_6], %5 {strides = array<i32>} : memref<8x128xf32, #tpu.memory_space<vmem>>, vector<8x128xf32>,
    return
  }
  func.func @transform_0(%arg0: i32, %arg1: i32) -> (i32, i32) {
    %c0_i32 = arith.constant 0 : i32
    %c0_i32_0 = arith.constant 0 : i32
    return %arg0, %c0_i32 : i32, i32
  }
  func.func @transform_1(%arg0: i32, %arg1: i32) -> (i32, i32) {
    %c0_i32 = arith.constant 0 : i32
    %c0_i32_0 = arith.constant 0 : i32
    return %c0_i32, %arg1 : i32, i32
  }
  func.func @transform_2(%arg0: i32, %arg1: i32) -> (i32, i32) {
    %c0_i32 = arith.constant 0 : i32
    %c0_i32_0 = arith.constant 0 : i32
    return %c0_i32, %arg1 : i32, i32
  }
  func.func @transform_3(%arg0: i32, %arg1: i32) -> (i32, i32) {
    %c0_i32 = arith.constant 0 : i32
    return %arg0, %arg1 : i32, i32
  }
}

</mosaic_0001>

<llo_original>
// kernel: tpu_custom_call.1
$region0: #{tpu_custom_call.1}
  #allocation0 [shape = 'u32[]', space=smem, size = 0x4, offset = 0x4, fixed_abs, tag = 'smem constant byte address 0x4 - core index']
  #allocation1 [shape = 'u32[144,128]{1,0:T(1,128)}', space=vmem, size = 0x12000, scoped, tag = 'internal scratch']
  %s0 = inlined_call_operand.vmem [shape: f32[8,32], index: 0, kind: input, shape index: {}]
  %s1 = inlined_call_operand.vmem [shape: f32[32,16], index: 1, kind: input, shape index: {}]
  %s2 = inlined_call_operand.vmem [shape: f32[1,16], index: 2, kind: input, shape index: {}]
  %s3 = inlined_call_operand.hbm [shape: f32[8,16], index: 3, kind: output, shape index: {}]
  %s4 = sld [smem:[#allocation0]]
  $region22: #{tpu_custom_call.1} parent=0
    _
  %s6 = ssub.s32 1, %s4
  %s7 = scalar_select 0, %s6, %s4
  $region1: #{tpu_custom_call.1} parent=0
    #allocation2 [shape = 'u8[4096]{0}', space=vmem, size = 0x1000, scoped, tag = 'output window, operand 0, single buffered']
    #allocation3 [shape = 's32[1]{0}', space=sflag, size = 0x4, scoped, tag = 'scoped memory for tpu_custom_call.1']
    %8 = vsyncpa [#allocation3], 0
    // Predicated region
    $region2: #{tpu_custom_call.1} parent=1 // pred_check
      _
    $region3: #{tpu_custom_call.1} parent=1 // pred_check_branch
      %10 = sbr.rel (0) target = $region5
    $region4: #{tpu_custom_call.1} parent=1 // pred_region
      _
    $region5: #{tpu_custom_call.1} parent=1 // pred_fallthru
      _
    // Predicated region
    $region6: #{tpu_custom_call.1} parent=1 // pred_check
      _
    $region7: #{tpu_custom_call.1} parent=1 // pred_check_branch
      %12 = sbr.rel (0) target = $region9
    $region8: #{tpu_custom_call.1} parent=1 // pred_region
      _
    $region9: #{tpu_custom_call.1} parent=1 // pred_fallthru
      _
    // Predicated region
    $region10: #{tpu_custom_call.1} parent=1 // pred_check
      _
    $region11: #{tpu_custom_call.1} parent=1 // pred_check_branch
      %14 = sbr.rel (0) target = $region13
    $region12: #{tpu_custom_call.1} parent=1 // pred_region
      _
    $region13: #{tpu_custom_call.1} parent=1 // pred_fallthru
      _
    %v15 = vld [vmem:[%s0] sm:$0xff]
    %v16 = vld [vmem:[%s1] sm:$0xff]
    %v17 = vld [vmem:[%s1 + $0x8] sm:$0xff]
    %v18 = vld [vmem:[%s1 + $0x10] sm:$0xff]
    %v19 = vld [vmem:[%s1 + $0x18] sm:$0xff]
    %v20 = vld [vmem:[%s2] sm:$0x1]
    %v22 = vlaneseq
    %v23 = vshrl.u32 %v22, 7
    %v24 = vsub.s32 0, %v23
    %v25 = vrot.slane %v20, %v24
    %vm27 = vcmask 261120
    %v29 = vsel %vm27, %v15, 0
    %31 = vmatprep.subr.mxu0 0.0
    %32 = vmatpush1.msra.mxu0 0.0
    %33 = vmatprep.subr.mxu0 0.0
    %34 = vmatpush1.msra.mxu0 0.0
    %35 = vmatprep.subr.mxu0 0.0
    %36 = vmatpush1.msra.mxu0 0.0
    %37 = vmatprep.subr.mxu0 0.0
    %38 = vmatpush1.msra.mxu0 0.0
    %39 = vmatprep.subr.mxu0 0.0
    %40 = vmatpush1.msra.mxu0 0.0
    %41 = vmatprep.subr.mxu0 0.0
    %42 = vmatpush1.msra.mxu0 0.0
    %43 = vmatprep.subr.mxu0 0.0
    %44 = vmatpush1.msra.mxu0 0.0
    %45 = vmatprep.subr.mxu0 0.0
    %46 = vmatpush1.msra.mxu0 0.0
    %47 = vmatprep.subr.mxu0 0.0
    %48 = vmatpush1.msra.mxu0 0.0
    %49 = vmatprep.subr.mxu0 0.0
    %50 = vmatpush1.msra.mxu0 0.0
    %51 = vmatprep.subr.mxu0 0.0
    %52 = vmatpush1.msra.mxu0 0.0
    %53 = vmatprep.subr.mxu0 0.0
    %54 = vmatpush1.msra.mxu0 0.0
    %55 = vmatprep.subr.mxu0 0.0
    %56 = vmatpush1.msra.mxu0 %v19
    %57 = vmatprep.subr.mxu0 0.0
    %58 = vmatpush1.msra.mxu0 %v18
    %59 = vmatprep.subr.mxu0 0.0
    %60 = vmatpush1.msra.mxu0 %v17
    %61 = vmatprep.subr.mxu0 0.0
    %62 = vmatpush1.msra.mxu0 %v16
    %63 = vmatprep.subr.mxu0 0.0
    %64 = vmatpush2.msra.mxu0 0.0
    %65 = vmatprep.subr.mxu0 0.0
    %66 = vmatpush2.msra.mxu0 0.0
    %67 = vmatprep.subr.mxu0 0.0
    %68 = vmatpush2.msra.mxu0 0.0
    %69 = vmatprep.subr.mxu0 0.0
    %70 = vmatpush2.msra.mxu0 0.0
    %71 = vmatprep.subr.mxu0 0.0
    %72 = vmatpush2.msra.mxu0 0.0
    %73 = vmatprep.subr.mxu0 0.0
    %74 = vmatpush2.msra.mxu0 0.0
    %75 = vmatprep.subr.mxu0 0.0
    %76 = vmatpush2.msra.mxu0 0.0
    %77 = vmatprep.subr.mxu0 0.0
    %78 = vmatpush2.msra.mxu0 0.0
    %79 = vmatprep.subr.mxu0 0.0
    %80 = vmatpush2.msra.mxu0 0.0
    %81 = vmatprep.subr.mxu0 0.0
    %82 = vmatpush2.msra.mxu0 0.0
    %83 = vmatprep.subr.mxu0 0.0
    %84 = vmatpush2.msra.mxu0 0.0
    %85 = vmatprep.subr.mxu0 0.0
    %86 = vmatpush2.msra.mxu0 0.0
    %87 = vmatprep.subr.mxu0 0.0
    %88 = vmatpush2.msra.mxu0 0.0
    %89 = vmatprep.subr.mxu0 0.0
    %90 = vmatpush2.msra.mxu0 0.0
    %91 = vmatprep.subr.mxu0 0.0
    %92 = vmatpush2.msra.mxu0 0.0
    %93 = vmatprep.subr.mxu0 0.0
    %94 = vmatpush2.msra.mxu0 0.0
    %95 = vmatprep.mubr.f32.mxu0 0.0
    %96 = vmatmul.mubr.f32.gmra.mxu0 %v29
    %v97 = vpop.f32.mrf.mxu0
    %v98 = vadd.f32 %v25, %v97
    %v99 = vpop.f32.mrf.mxu0
    %100 = vdwg.mxu0
    %101 = vst [vmem:[#allocation2] sm:$0xff] %v98
    // Predicated region
    $region14: #{tpu_custom_call.1} parent=1 // pred_check
      _
    $region15: #{tpu_custom_call.1} parent=1 // pred_check_branch
      %103 = sbr.rel (0) target = $region17
    $region16: #{tpu_custom_call.1} parent=1 // pred_region
      %s105 = ssub.s32 128, 128
      %106 = vsyncadd [#allocation3], %s105
      %s108 = sshll.u32 [#allocation2], 4
      %s109 = int_to_ptr.vmem [resolvable:$true] %s108
      %111 = dma.vmem_to_hbm [thread:$0]  %s109, 128, %s3, [#allocation3]
    $region17: #{tpu_custom_call.1} parent=1 // pred_fallthru
      _
    // Predicated region
    $region18: #{tpu_custom_call.1} parent=1 // pred_check
      _
    $region19: #{tpu_custom_call.1} parent=1 // pred_check_branch
      %113 = sbr.rel (0) target = $region21
    $region20: #{tpu_custom_call.1} parent=1 // pred_region
      %114 = dma.done [#allocation3], 128
    $region21: #{tpu_custom_call.1} parent=1 // pred_fallthru
      _
    %115 = vsyncpa [#allocation3], 1

</llo_original>
